<compile_context>
chip_gen: v7x
topology: tpu7x:2x2x1
jax: 0.10.0
libtpu: 0.0.40
codegen_flags: <defaults>
</compile_context>

<pallas_src>
import math

import jax
import jax.numpy as jnp
from jax.experimental import pallas as pl
from jax.experimental.pallas import tpu as pltpu


IN_F, H1_F, H2_F, OUT_F = 2, 10, 10, 1


def _mlp_kernel(x_ref, w1_ref, b1_ref, w2_ref, b2_ref, w3_ref, b3_ref, o_ref):
    # Layouts (batch on lanes):
    #   x_ref: [2, TB]    w1: [10, 2]   b1: [10, 1]
    #   w2:    [10, 10]   b2: [10, 1]
    #   w3:    [10, 1]    b3: [1, 1]    o_ref: [1, TB]
    x = x_ref[...]
    w1 = w1_ref[...]

    # Layer 1 (fan_in = 2): two VPU broadcast FMAs instead of a K=2 MXU matmul.
    h1 = w1[:, 0:1] * x[0:1, :] + (w1[:, 1:2] * x[1:2, :] + b1_ref[...])
    h1 = jnp.maximum(h1, 0.0)                                   # [10, TB]

    # Layer 2 (10 x 10): statically unrolled VPU FMAs — exact f32, lane-dense,
    # avoids a mostly-empty MXU push/pop for this tiny contraction.
    w2 = w2_ref[...]
    h2 = w2[:, 0:1] * h1[0:1, :]
    for k in range(1, H1_F):                                    # static unroll (tiny, fixed)
        h2 = h2 + w2[:, k:k + 1] * h1[k:k + 1, :]
    h2 = jnp.maximum(h2 + b2_ref[...], 0.0)                     # [10, TB]

    # Layer 3 (fan_out = 1): lane-dense multiply + cross-sublane (XLU) reduce.
    out = jnp.sum(w3_ref[...] * h2, axis=0, keepdims=True) + b3_ref[...]   # [1, TB]
    o_ref[...] = out.astype(o_ref.dtype)


def _round_up(n, m):
    return ((n + m - 1) // m) * m


def circle_model_forward(x, params, *, batch_tile=1024):
    """x: [B, 2] float32 -> [B, 1] float32 logits (matches CircleModel.forward)."""
    assert batch_tile % 128 == 0, "batch_tile must be a multiple of 128 lanes"
    B = x.shape[0]
    w1, b1 = params["w1"], params["b1"]
    w2, b2 = params["w2"], params["b2"]
    w3, b3 = params["w3"], params["b3"]

    # Batch-on-lanes layout; pad the batch (lane) axis up to a multiple of the tile.
    tb = min(batch_tile, _round_up(B, 128))
    bp = _round_up(B, tb)
    xt = jnp.pad(x.astype(jnp.float32).T, ((0, 0), (0, bp - B)))        # [2, Bp]

    grid = (bp // tb,)
    const = lambda i: (0, 0)    # parameters: constant block -> stay resident in VMEM

    flops = 2 * bp * (IN_F * H1_F + H1_F * H2_F + H2_F * OUT_F)
    param_bytes = 4 * (IN_F * H1_F + H1_F + H1_F * H2_F + H2_F + H2_F * OUT_F + OUT_F)
    cost = pl.CostEstimate(
        flops=flops,
        transcendentals=0,
        bytes_accessed=4 * bp * (IN_F + OUT_F) + param_bytes,
    )

    out = pl.pallas_call(
        _mlp_kernel,
        out_shape=jax.ShapeDtypeStruct((1, bp), jnp.float32),
        grid=grid,
        in_specs=[
            pl.BlockSpec((IN_F, tb), lambda i: (0, i)),     # x tile (pipelined over batch)
            pl.BlockSpec((H1_F, IN_F), const),              # w1
            pl.BlockSpec((H1_F, 1), const),                 # b1
            pl.BlockSpec((H2_F, H1_F), const),              # w2
            pl.BlockSpec((H2_F, 1), const),                 # b2
            pl.BlockSpec((H2_F, OUT_F), const),             # w3 (stored [in, out])
            pl.BlockSpec((OUT_F, 1), const),                # b3
        ],
        out_specs=pl.BlockSpec((1, tb), lambda i: (0, i)),  # lane-dense output tile
        compiler_params=pltpu.CompilerParams(dimension_semantics=("parallel",)),
        cost_estimate=cost,
    )(xt, w1, b1, w2, b2, w3, b3)

    return out[:, :B].T                                     # [B, 1]


def init_params(key):
    """nn.Linear default init: U(-1/sqrt(fan_in), +1/sqrt(fan_in)).

    Kernel layout (batch-on-lanes):
      w1: [10, 2]  (PyTorch [out, in])    b1: [10, 1]
      w2: [10, 10] (PyTorch [out, in])    b2: [10, 1]
      w3: [10, 1]  (transposed to [in, out] for the sublane reduce)   b3: [1, 1]
    """
    def linear(key, fan_in, fan_out):
        kw, kb = jax.random.split(key)
        bound = 1.0 / math.sqrt(fan_in)
        w = jax.random.uniform(kw, (fan_out, fan_in), jnp.float32, -bound, bound)
        b = jax.random.uniform(kb, (fan_out, 1), jnp.float32, -bound, bound)
        return w, b

    k1, k2, k3 = jax.random.split(key, 3)
    w1, b1 = linear(k1, IN_F, H1_F)
    w2, b2 = linear(k2, H1_F, H2_F)
    w3, b3 = linear(k3, H2_F, OUT_F)
    return {"w1": w1, "b1": b1, "w2": w2, "b2": b2, "w3": w3.T, "b3": b3}


def _reference_forward(x, p):
    hp = jax.lax.Precision.HIGHEST
    h1 = jnp.maximum(jnp.dot(x, p["w1"].T, precision=hp) + p["b1"].T, 0.0)
    h2 = jnp.maximum(jnp.dot(h1, p["w2"].T, precision=hp) + p["b2"].T, 0.0)
    return jnp.dot(h2, p["w3"], precision=hp) + p["b3"].T


if __name__ == "__main__":
    key = jax.random.PRNGKey(0)
    kx, kp = jax.random.split(key)
    params = init_params(kp)

    # Small batch (pads to a single 128-lane tile).
    B = 8
    x = jax.random.normal(kx, (B, IN_F), dtype=jnp.float32)
    out = jax.block_until_ready(circle_model_forward(x, params))
    ref = _reference_forward(x, params)
    assert out.shape == (B, 1), out.shape
    assert jnp.allclose(out, ref, atol=1e-5, rtol=1e-5), "mismatch vs reference (small batch)"

    # Larger ragged batch: exercises the batch grid, pipelining and tail padding.
    B2 = 2500
    x2 = jax.random.normal(jax.random.PRNGKey(1), (B2, IN_F), dtype=jnp.float32)
    out2 = jax.block_until_ready(circle_model_forward(x2, params, batch_tile=512))
    ref2 = _reference_forward(x2, params)
    assert out2.shape == (B2, 1), out2.shape
    assert jnp.allclose(out2, ref2, atol=1e-5, rtol=1e-5), "mismatch vs reference (gridded batch)"

    print("KERNEL_OK")
</pallas_src>

<mosaic_0001>
module attributes {stable_mosaic.version = 11 : i64} {
  func.func @_mlp_kernel(%arg0: i32, %arg1: memref<2x128xf32, #tpu.memory_space<vmem>>, %arg2: memref<10x2xf32, #tpu.memory_space<vmem>>, %arg3: memref<10x1xf32, #tpu.memory_space<vmem>>, %arg4: memref<10x10xf32, #tpu.memory_space<vmem>>, %arg5: memref<10x1xf32, #tpu.memory_space<vmem>>, %arg6: memref<10x1xf32, #tpu.memory_space<vmem>>, %arg7: memref<1x1xf32, #tpu.memory_space<vmem>>, %arg8: memref<1x128xf32, #tpu.memory_space<vmem>>) attributes {dimension_semantics = [#tpu.dimension_semantics<parallel>], iteration_bounds = array<i64: 1>, scalar_prefetch = 0 : i64, scratch_operands = 0 : i64, tpu.core_type = #tpu.core_type<tc>, window_params = [{transform_indices = @transform_0, window_bounds = array<i64: 2, 128>}, {pipeline_mode = #tpu.pipeline_mode<synchronous>, transform_indices = @transform_1, window_bounds = array<i64: 10, 2>}, {pipeline_mode = #tpu.pipeline_mode<synchronous>, transform_indices = @transform_2, window_bounds = array<i64: 10, 1>}, {pipeline_mode = #tpu.pipeline_mode<synchronous>, transform_indices = @transform_3, window_bounds = array<i64: 10, 10>}, {pipeline_mode = #tpu.pipeline_mode<synchronous>, transform_indices = @transform_4, window_bounds = array<i64: 10, 1>}, {pipeline_mode = #tpu.pipeline_mode<synchronous>, transform_indices = @transform_5, window_bounds = array<i64: 10, 1>}, {pipeline_mode = #tpu.pipeline_mode<synchronous>, transform_indices = @transform_6, window_bounds = array<i64: 1, 1>}, {transform_indices = @transform_7, window_bounds = array<i64: 1, 128>}]} {
    %c0 = arith.constant 0 : index
    %c0_0 = arith.constant 0 : index
    %0 = vector.load %arg1[%c0, %c0_0] : memref<2x128xf32, #tpu.memory_space<vmem>>, vector<2x128xf32>
    %c0_1 = arith.constant 0 : index
    %c0_2 = arith.constant 0 : index
    %1 = vector.load %arg2[%c0_1, %c0_2] : memref<10x2xf32, #tpu.memory_space<vmem>>, vector<10x2xf32>
    %2 = vector.extract_strided_slice %1 {offsets = [0, 0], sizes = [10, 1], strides = [1, 1]} : vector<10x2xf32> to vector<10x1xf32>
    %3 = vector.extract_strided_slice %0 {offsets = [0, 0], sizes = [1, 128], strides = [1, 1]} : vector<2x128xf32> to vector<1x128xf32>
    %4 = vector.broadcast %2 : vector<10x1xf32> to vector<10x128xf32>
    %5 = vector.broadcast %3 : vector<1x128xf32> to vector<10x128xf32>
    %6 = arith.mulf %4, %5 : vector<10x128xf32>
    %7 = vector.extract_strided_slice %1 {offsets = [0, 1], sizes = [10, 1], strides = [1, 1]} : vector<10x2xf32> to vector<10x1xf32>
    %8 = vector.extract_strided_slice %0 {offsets = [1, 0], sizes = [1, 128], strides = [1, 1]} : vector<2x128xf32> to vector<1x128xf32>
    %9 = vector.broadcast %7 : vector<10x1xf32> to vector<10x128xf32>
    %10 = vector.broadcast %8 : vector<1x128xf32> to vector<10x128xf32>
    %11 = arith.mulf %9, %10 : vector<10x128xf32>
    %c0_3 = arith.constant 0 : index
    %c0_4 = arith.constant 0 : index
    %12 = vector.load %arg3[%c0_3, %c0_4] : memref<10x1xf32, #tpu.memory_space<vmem>>, vector<10x1xf32>
    %13 = vector.broadcast %12 : vector<10x1xf32> to vector<10x128xf32>
    %14 = arith.addf %11, %13 : vector<10x128xf32>
    %15 = arith.addf %6, %14 : vector<10x128xf32>
    %cst = arith.constant 0.000000e+00 : f32
    %16 = vector.broadcast %cst : f32 to vector<10x128xf32>
    %17 = arith.maximumf %15, %16 : vector<10x128xf32>
    %c0_5 = arith.constant 0 : index
    %c0_6 = arith.constant 0 : index
    %18 = vector.load %arg4[%c0_5, %c0_6] : memref<10x10xf32, #tpu.memory_space<vmem>>, vector<10x10xf32>
    %19 = vector.extract_strided_slice %18 {offsets = [0, 0], sizes = [10, 1], strides = [1, 1]} : vector<10x10xf32> to vector<10x1xf32>
    %20 = vector.extract_strided_slice %17 {offsets = [0, 0], sizes = [1, 128], strides = [1, 1]} : vector<10x128xf32> to vector<1x128xf32>
    %21 = vector.broadcast %19 : vector<10x1xf32> to vector<10x128xf32>
    %22 = vector.broadcast %20 : vector<1x128xf32> to vector<10x128xf32>
    %23 = arith.mulf %21, %22 : vector<10x128xf32>
    %24 = vector.extract_strided_slice %18 {offsets = [0, 1], sizes = [10, 1], strides = [1, 1]} : vector<10x10xf32> to vector<10x1xf32>
    %25 = vector.extract_strided_slice %17 {offsets = [1, 0], sizes = [1, 128], strides = [1, 1]} : vector<10x128xf32> to vector<1x128xf32>
    %26 = vector.broadcast %24 : vector<10x1xf32> to vector<10x128xf32>
    %27 = vector.broadcast %25 : vector<1x128xf32> to vector<10x128xf32>
    %28 = arith.mulf %26, %27 : vector<10x128xf32>
    %29 = arith.addf %23, %28 : vector<10x128xf32>
    %30 = vector.extract_strided_slice %18 {offsets = [0, 2], sizes = [10, 1], strides = [1, 1]} : vector<10x10xf32> to vector<10x1xf32>
    %31 = vector.extract_strided_slice %17 {offsets = [2, 0], sizes = [1, 128], strides = [1, 1]} : vector<10x128xf32> to vector<1x128xf32>
    %32 = vector.broadcast %30 : vector<10x1xf32> to vector<10x128xf32>
    %33 = vector.broadcast %31 : vector<1x128xf32> to vector<10x128xf32>
    %34 = arith.mulf %32, %33 : vector<10x128xf32>
    %35 = arith.addf %29, %34 : vector<10x128xf32>
    %36 = vector.extract_strided_slice %18 {offsets = [0, 3], sizes = [10, 1], strides = [1, 1]} : vector<10x10xf32> to vector<10x1xf32>
    %37 = vector.extract_strided_slice %17 {offsets = [3, 0], sizes = [1, 128], strides = [1, 1]} : vector<10x128xf32> to vector<1x128xf32>
    %38 = vector.broadcast %36 : vector<10x1xf32> to vector<10x128xf32>
    %39 = vector.broadcast %37 : vector<1x128xf32> to vector<10x128xf32>
    %40 = arith.mulf %38, %39 : vector<10x128xf32>
    %41 = arith.addf %35, %40 : vector<10x128xf32>
    %42 = vector.extract_strided_slice %18 {offsets = [0, 4], sizes = [10, 1], strides = [1, 1]} : vector<10x10xf32> to vector<10x1xf32>
    %43 = vector.extract_strided_slice %17 {offsets = [4, 0], sizes = [1, 128], strides = [1, 1]} : vector<10x128xf32> to vector<1x128xf32>
    %44 = vector.broadcast %42 : vector<10x1xf32> to vector<10x128xf32>
    %45 = vector.broadcast %43 : vector<1x128xf32> to vector<10x128xf32>
    %46 = arith.mulf %44, %45 : vector<10x128xf32>
    %47 = arith.addf %41, %46 : vector<10x128xf32>
    %48 = vector.extract_strided_slice %18 {offsets = [0, 5], sizes = [10, 1], strides = [1, 1]} : vector<10x10xf32> to vector<10x1xf32>
    %49 = vector.extract_strided_slice %17 {offsets = [5, 0], sizes = [1, 128], strides = [1, 1]} : vector<10x128xf32> to vector<1x128xf32>
    %50 = vector.broadcast %48 : vector<10x1xf32> to vector<10x128xf32>
    %51 = vector.broadcast %49 : vector<1x128xf32> to vector<10x128xf32>
    %52 = arith.mulf %50, %51 : vector<10x128xf32>
    %53 = arith.addf %47, %52 : vector<10x128xf32>
    %54 = vector.extract_strided_slice %18 {offsets = [0, 6], sizes = [10, 1], strides = [1, 1]} : vector<10x10xf32> to vector<10x1xf32>
    %55 = vector.extract_strided_slice %17 {offsets = [6, 0], sizes = [1, 128], strides = [1, 1]} : vector<10x128xf32> to vector<1x128xf32>
    %56 = vector.broadcast %54 : vector<10x1xf32> to vector<10x128xf32>
    %57 = vector.broadcast %55 : vector<1x128xf32> to vector<10x128xf32>
    %58 = arith.mulf %56, %57 : vector<10x128xf32>
    %59 = arith.addf %53, %58 : vector<10x128xf32>
    %60 = vector.extract_strided_slice %18 {offsets = [0, 7], sizes = [10, 1], strides = [1, 1]} : vector<10x10xf32> to vector<10x1xf32>
    %61 = vector.extract_strided_slice %17 {offsets = [7, 0], sizes = [1, 128], strides = [1, 1]} : vector<10x128xf32> to vector<1x128xf32>
    %62 = vector.broadcast %60 : vector<10x1xf32> to vector<10x128xf32>
    %63 = vector.broadcast %61 : vector<1x128xf32> to vector<10x128xf32>
    %64 = arith.mulf %62, %63 : vector<10x128xf32>
    %65 = arith.addf %59, %64 : vector<10x128xf32>
    %66 = vector.extract_strided_slice %18 {offsets = [0, 8], sizes = [10, 1], strides = [1, 1]} : vector<10x10xf32> to vector<10x1xf32>
    %67 = vector.extract_strided_slice %17 {offsets = [8, 0], sizes = [1, 128], strides = [1, 1]} : vector<10x128xf32> to vector<1x128xf32>
    %68 = vector.broadcast %66 : vector<10x1xf32> to vector<10x128xf32>
    %69 = vector.broadcast %67 : vector<1x128xf32> to vector<10x128xf32>
    %70 = arith.mulf %68, %69 : vector<10x128xf32>
    %71 = arith.addf %65, %70 : vector<10x128xf32>
    %72 = vector.extract_strided_slice %18 {offsets = [0, 9], sizes = [10, 1], strides = [1, 1]} : vector<10x10xf32> to vector<10x1xf32>
    %73 = vector.extract_strided_slice %17 {offsets = [9, 0], sizes = [1, 128], strides = [1, 1]} : vector<10x128xf32> to vector<1x128xf32>
    %74 = vector.broadcast %72 : vector<10x1xf32> to vector<10x128xf32>
    %75 = vector.broadcast %73 : vector<1x128xf32> to vector<10x128xf32>
    %76 = arith.mulf %74, %75 : vector<10x128xf32>
    %77 = arith.addf %71, %76 : vector<10x128xf32>
    %c0_7 = arith.constant 0 : index
    %c0_8 = arith.constant 0 : index
    %78 = vector.load %arg5[%c0_7, %c0_8] : memref<10x1xf32, #tpu.memory_space<vmem>>, vector<10x1xf32>
    %79 = vector.broadcast %78 : vector<10x1xf32> to vector<10x128xf32>
    %80 = arith.addf %77, %79 : vector<10x128xf32>
    %cst_9 = arith.constant 0.000000e+00 : f32
    %81 = vector.broadcast %cst_9 : f32 to vector<10x128xf32>
    %82 = arith.maximumf %80, %81 : vector<10x128xf32>
    %c0_10 = arith.constant 0 : index
    %c0_11 = arith.constant 0 : index
    %83 = vector.load %arg6[%c0_10, %c0_11] : memref<10x1xf32, #tpu.memory_space<vmem>>, vector<10x1xf32>
    %84 = vector.broadcast %83 : vector<10x1xf32> to vector<10x128xf32>
    %85 = arith.mulf %84, %82 : vector<10x128xf32>
    %cst_12 = arith.constant dense<0.000000e+00> : vector<128xf32>
    %86 = vector.multi_reduction <add>, %85, %cst_12 [0] : vector<10x128xf32> to vector<128xf32>
    %87 = vector.shape_cast %86 : vector<128xf32> to vector<1x128xf32>
    %c0_13 = arith.constant 0 : index
    %c0_14 = arith.constant 0 : index
    %88 = vector.load %arg7[%c0_13, %c0_14] : memref<1x1xf32, #tpu.memory_space<vmem>>, vector<1x1xf32>
    %89 = vector.broadcast %88 : vector<1x1xf32> to vector<1x128xf32>
    %90 = arith.addf %87, %89 : vector<1x128xf32>
    %c0_15 = arith.constant 0 : index
    %c0_16 = arith.constant 0 : index
    %91 = vector.load %arg8[%c0_15, %c0_16] : memref<1x128xf32, #tpu.memory_space<vmem>>, vector<1x128xf32>
    tpu.vector_store %arg8[%c0_15, %c0_16], %90 {strides = array<i32>} : memref<1x128xf32, #tpu.memory_space<vmem>>, vector<1x128xf32>,
    return
  }
  func.func @transform_0(%arg0: i32) -> (i32, i32) {
    %c0_i32 = arith.constant 0 : i32
    %c0_i32_0 = arith.constant 0 : i32
    return %c0_i32, %arg0 : i32, i32
  }
  func.func @transform_1(%arg0: i32) -> (i32, i32) {
    %c0_i32 = arith.constant 0 : i32
    %c0_i32_0 = arith.constant 0 : i32
    %c0_i32_1 = arith.constant 0 : i32
    return %c0_i32, %c0_i32_0 : i32, i32
  }
  func.func @transform_2(%arg0: i32) -> (i32, i32) {
    %c0_i32 = arith.constant 0 : i32
    %c0_i32_0 = arith.constant 0 : i32
    %c0_i32_1 = arith.constant 0 : i32
    return %c0_i32, %c0_i32_0 : i32, i32
  }
  func.func @transform_3(%arg0: i32) -> (i32, i32) {
    %c0_i32 = arith.constant 0 : i32
    %c0_i32_0 = arith.constant 0 : i32
    %c0_i32_1 = arith.constant 0 : i32
    return %c0_i32, %c0_i32_0 : i32, i32
  }
  func.func @transform_4(%arg0: i32) -> (i32, i32) {
    %c0_i32 = arith.constant 0 : i32
    %c0_i32_0 = arith.constant 0 : i32
    %c0_i32_1 = arith.constant 0 : i32
    return %c0_i32, %c0_i32_0 : i32, i32
  }
  func.func @transform_5(%arg0: i32) -> (i32, i32) {
    %c0_i32 = arith.constant 0 : i32
    %c0_i32_0 = arith.constant 0 : i32
    %c0_i32_1 = arith.constant 0 : i32
    return %c0_i32, %c0_i32_0 : i32, i32
  }
  func.func @transform_6(%arg0: i32) -> (i32, i32) {
    %c0_i32 = arith.constant 0 : i32
    %c0_i32_0 = arith.constant 0 : i32
    %c0_i32_1 = arith.constant 0 : i32
    return %c0_i32, %c0_i32_0 : i32, i32
  }
  func.func @transform_7(%arg0: i32) -> (i32, i32) {
    %c0_i32 = arith.constant 0 : i32
    %c0_i32_0 = arith.constant 0 : i32
    return %c0_i32, %arg0 : i32, i32
  }
}

</mosaic_0001>

<llo_original>
// kernel: tpu_custom_call.1
$region0: #{tpu_custom_call.1}
  #allocation0 [shape = 'u32[]', space=smem, size = 0x4, offset = 0x4, fixed_abs, tag = 'smem constant byte address 0x4 - core index']
  #allocation1 [shape = 'u32[144,128]{1,0:T(1,128)}', space=vmem, size = 0x12000, scoped, tag = 'internal scratch']
  #allocation2 [shape = 'f32[1,1]{1,0:T(1,128)S(1)}', space=vmem, size = 0x200, scoped, tag = 'scoped memory for tpu_custom_call.1']
  %s0 = inlined_call_operand.vmem [shape: f32[2,128], index: 0, kind: input, shape index: {}]
  %s1 = inlined_call_operand.vmem [shape: f32[10,2], index: 1, kind: input, shape index: {}]
  %s2 = inlined_call_operand.vmem [shape: f32[10,1], index: 2, kind: input, shape index: {}]
  %s3 = inlined_call_operand.vmem [shape: f32[10,10], index: 3, kind: input, shape index: {}]
  %s4 = inlined_call_operand.vmem [shape: f32[10,1], index: 4, kind: input, shape index: {}]
  %s5 = inlined_call_operand.vmem [shape: f32[10,1], index: 5, kind: input, shape index: {}]
  %s6 = inlined_call_operand.<no memory space> [shape: f32[1,1], index: 6, kind: input, shape index: {}]
  %s7 = inlined_call_operand.hbm [shape: f32[1,128], index: 7, kind: output, shape index: {}]
  %s8 = sld [smem:[#allocation0]]
  $region38: #{tpu_custom_call.1} parent=0
    _
  %s10 = ssub.s32 1, %s8
  %s11 = scalar_select 0, %s10, %s8
  %v12 = vstv %s6
  %13 = vst [vmem:[#allocation2] sm:$0x1] %v12
  $region1: #{tpu_custom_call.1} parent=0
    #allocation3 [shape = 'u8[512]{0}', space=vmem, size = 0x400, scoped, tag = 'output window, operand 0, single buffered']
    #allocation4 [shape = 's32[1]{0}', space=sflag, size = 0x4, scoped, tag = 'scoped memory for tpu_custom_call.1']
    %14 = vsyncpa [#allocation4], 0
    // Predicated region
    $region2: #{tpu_custom_call.1} parent=1 // pred_check
      _
    $region3: #{tpu_custom_call.1} parent=1 // pred_check_branch
      %16 = sbr.rel (0) target = $region5
    $region4: #{tpu_custom_call.1} parent=1 // pred_region
      _
    $region5: #{tpu_custom_call.1} parent=1 // pred_fallthru
      _
    // Predicated region
    $region6: #{tpu_custom_call.1} parent=1 // pred_check
      _
    $region7: #{tpu_custom_call.1} parent=1 // pred_check_branch
      %18 = sbr.rel (0) target = $region9
    $region8: #{tpu_custom_call.1} parent=1 // pred_region
      _
    $region9: #{tpu_custom_call.1} parent=1 // pred_fallthru
      _
    // Predicated region
    $region10: #{tpu_custom_call.1} parent=1 // pred_check
      _
    $region11: #{tpu_custom_call.1} parent=1 // pred_check_branch
      %20 = sbr.rel (0) target = $region13
    $region12: #{tpu_custom_call.1} parent=1 // pred_region
      _
    $region13: #{tpu_custom_call.1} parent=1 // pred_fallthru
      _
    // Predicated region
    $region14: #{tpu_custom_call.1} parent=1 // pred_check
      _
    $region15: #{tpu_custom_call.1} parent=1 // pred_check_branch
      %22 = sbr.rel (0) target = $region17
    $region16: #{tpu_custom_call.1} parent=1 // pred_region
      _
    $region17: #{tpu_custom_call.1} parent=1 // pred_fallthru
      _
    // Predicated region
    $region18: #{tpu_custom_call.1} parent=1 // pred_check
      _
    $region19: #{tpu_custom_call.1} parent=1 // pred_check_branch
      %24 = sbr.rel (0) target = $region21
    $region20: #{tpu_custom_call.1} parent=1 // pred_region
      _
    $region21: #{tpu_custom_call.1} parent=1 // pred_fallthru
      _
    // Predicated region
    $region22: #{tpu_custom_call.1} parent=1 // pred_check
      _
    $region23: #{tpu_custom_call.1} parent=1 // pred_check_branch
      %26 = sbr.rel (0) target = $region25
    $region24: #{tpu_custom_call.1} parent=1 // pred_region
      _
    $region25: #{tpu_custom_call.1} parent=1 // pred_fallthru
      _
    // Predicated region
    $region26: #{tpu_custom_call.1} parent=1 // pred_check
      _
    $region27: #{tpu_custom_call.1} parent=1 // pred_check_branch
      %28 = sbr.rel (0) target = $region29
    $region28: #{tpu_custom_call.1} parent=1 // pred_region
      _
    $region29: #{tpu_custom_call.1} parent=1 // pred_fallthru
      _
    %v29 = vld [vmem:[%s0] sm:$0x3]
    %v30 = vld [vmem:[%s1] sm:$0xff]
    %v31 = vld [vmem:[%s1 + $0x8] sm:$0x3]
    %33 = vset.pattern.permute.xlu0 0
    %34 = vperm.xlu0 %33, %v30
    %v35 = vpop.permute.xlu0 %34
    %38 = vset.pattern.permute.xlu0 0
    %39 = vperm.xlu0 %38, %v31
    %v40 = vpop.permute.xlu0 %39
    %v42 = vlaneseq
    %v43 = vshrl.u32 %v42, 7
    %v44 = vsub.s32 0, %v43
    %v45 = vrot.slane %v29, %v44
    %v46 = vmul.f32 %v35, %v45
    %v47 = vmul.f32 %v40, %v45
    %48 = vset.pattern.permute.xlu0 1
    %49 = vperm.xlu0 %48, %v30
    %v50 = vpop.permute.xlu0 %49
    %52 = vset.pattern.permute.xlu0 1
    %53 = vperm.xlu0 %52, %v31
    %v54 = vpop.permute.xlu0 %53
    %v56 = vlaneseq
    %v57 = vshrl.u32 %v56, 7
    %v58 = vsub.s32 1, %v57
    %v59 = vrot.slane %v29, %v58
    %v60 = vmul.f32 %v50, %v59
    %v61 = vmul.f32 %v54, %v59
    %v62 = vld [vmem:[%s2] sm:$0xff]
    %v63 = vld [vmem:[%s2 + $0x8] sm:$0x3]
    %65 = vset.pattern.permute.xlu0 0
    %66 = vperm.xlu0 %65, %v62
    %v67 = vpop.permute.xlu0 %66
    %70 = vset.pattern.permute.xlu0 0
    %71 = vperm.xlu0 %70, %v63
    %v72 = vpop.permute.xlu0 %71
    %v74 = vadd.f32 %v60, %v67
    %v75 = vadd.f32 %v61, %v72
    %v76 = vadd.f32 %v46, %v74
    %v77 = vadd.f32 %v47, %v75
    %v78 = vmax.f32 %v76, 0.0
    %v79 = vmax.f32 %v77, 0.0
    %v80 = vld [vmem:[%s3] sm:$0xff]
    %v81 = vld [vmem:[%s3 + $0x8] sm:$0x3]
    %83 = vset.pattern.permute.xlu0 0
    %84 = vperm.xlu0 %83, %v80
    %v85 = vpop.permute.xlu0 %84
    %88 = vset.pattern.permute.xlu0 0
    %89 = vperm.xlu0 %88, %v81
    %v90 = vpop.permute.xlu0 %89
    %v92 = vlaneseq
    %v93 = vshrl.u32 %v92, 7
    %v94 = vsub.s32 0, %v93
    %v95 = vrot.slane %v78, %v94
    %v96 = vmul.f32 %v85, %v95
    %v97 = vmul.f32 %v90, %v95
    %98 = vset.pattern.permute.xlu0 1
    %99 = vperm.xlu0 %98, %v80
    %v100 = vpop.permute.xlu0 %99
    %102 = vset.pattern.permute.xlu0 1
    %103 = vperm.xlu0 %102, %v81
    %v104 = vpop.permute.xlu0 %103
    %v106 = vlaneseq
    %v107 = vshrl.u32 %v106, 7
    %v108 = vsub.s32 1, %v107
    %v109 = vrot.slane %v78, %v108
    %v110 = vmul.f32 %v100, %v109
    %v111 = vmul.f32 %v104, %v109
    %v112 = vadd.f32 %v96, %v110
    %v113 = vadd.f32 %v97, %v111
    %114 = vset.pattern.permute.xlu0 2
    %115 = vperm.xlu0 %114, %v80
    %v116 = vpop.permute.xlu0 %115
    %118 = vset.pattern.permute.xlu0 2
    %119 = vperm.xlu0 %118, %v81
    %v120 = vpop.permute.xlu0 %119
    %v122 = vlaneseq
    %v123 = vshrl.u32 %v122, 7
    %v124 = vsub.s32 2, %v123
    %v125 = vrot.slane %v78, %v124
    %v126 = vmul.f32 %v116, %v125
    %v127 = vmul.f32 %v120, %v125
    %v128 = vadd.f32 %v112, %v126
    %v129 = vadd.f32 %v113, %v127
    %130 = vset.pattern.permute.xlu0 3
    %131 = vperm.xlu0 %130, %v80
    %v132 = vpop.permute.xlu0 %131
    %134 = vset.pattern.permute.xlu0 3
    %135 = vperm.xlu0 %134, %v81
    %v136 = vpop.permute.xlu0 %135
    %v138 = vlaneseq
    %v139 = vshrl.u32 %v138, 7
    %v140 = vsub.s32 3, %v139
    %v141 = vrot.slane %v78, %v140
    %v142 = vmul.f32 %v132, %v141
    %v143 = vmul.f32 %v136, %v141
    %v144 = vadd.f32 %v128, %v142
    %v145 = vadd.f32 %v129, %v143
    %146 = vset.pattern.permute.xlu0 4
    %147 = vperm.xlu0 %146, %v80
    %v148 = vpop.permute.xlu0 %147
    %150 = vset.pattern.permute.xlu0 4
    %151 = vperm.xlu0 %150, %v81
    %v152 = vpop.permute.xlu0 %151
    %v154 = vlaneseq
    %v155 = vshrl.u32 %v154, 7
    %v156 = vsub.s32 4, %v155
    %v157 = vrot.slane %v78, %v156
    %v158 = vmul.f32 %v148, %v157
    %v159 = vmul.f32 %v152, %v157
    %v160 = vadd.f32 %v144, %v158
    %v161 = vadd.f32 %v145, %v159
    %162 = vset.pattern.permute.xlu0 5
    %163 = vperm.xlu0 %162, %v80
    %v164 = vpop.permute.xlu0 %163
    %166 = vset.pattern.permute.xlu0 5
    %167 = vperm.xlu0 %166, %v81
    %v168 = vpop.permute.xlu0 %167
    %v170 = vlaneseq
    %v171 = vshrl.u32 %v170, 7
    %v172 = vsub.s32 5, %v171
    %v173 = vrot.slane %v78, %v172
    %v174 = vmul.f32 %v164, %v173
    %v175 = vmul.f32 %v168, %v173
    %v176 = vadd.f32 %v160, %v174
    %v177 = vadd.f32 %v161, %v175
    %178 = vset.pattern.permute.xlu0 6
    %179 = vperm.xlu0 %178, %v80
    %v180 = vpop.permute.xlu0 %179
    %182 = vset.pattern.permute.xlu0 6
    %183 = vperm.xlu0 %182, %v81
    %v184 = vpop.permute.xlu0 %183
    %v186 = vlaneseq
    %v187 = vshrl.u32 %v186, 7
    %v188 = vsub.s32 6, %v187
    %v189 = vrot.slane %v78, %v188
    %v190 = vmul.f32 %v180, %v189
    %v191 = vmul.f32 %v184, %v189
    %v192 = vadd.f32 %v176, %v190
    %v193 = vadd.f32 %v177, %v191
    %194 = vset.pattern.permute.xlu0 7
    %195 = vperm.xlu0 %194, %v80
    %v196 = vpop.permute.xlu0 %195
    %198 = vset.pattern.permute.xlu0 7
    %199 = vperm.xlu0 %198, %v81
    %v200 = vpop.permute.xlu0 %199
    %v202 = vlaneseq
    %v203 = vshrl.u32 %v202, 7
    %v204 = vsub.s32 7, %v203
    %v205 = vrot.slane %v78, %v204
    %v206 = vmul.f32 %v196, %v205
    %v207 = vmul.f32 %v200, %v205
    %v208 = vadd.f32 %v192, %v206
    %v209 = vadd.f32 %v193, %v207
    %210 = vset.pattern.permute.xlu0 8
    %211 = vperm.xlu0 %210, %v80
    %v212 = vpop.permute.xlu0 %211
    %214 = vset.pattern.permute.xlu0 8
    %215 = vperm.xlu0 %214, %v81
    %v216 = vpop.permute.xlu0 %215
    %v218 = vlaneseq
    %v219 = vshrl.u32 %v218, 7
    %v220 = vsub.s32 0, %v219
    %v221 = vrot.slane %v79, %v220
    %v222 = vmul.f32 %v212, %v221
    %v223 = vmul.f32 %v216, %v221
    %v224 = vadd.f32 %v208, %v222
    %v225 = vadd.f32 %v209, %v223
    %226 = vset.pattern.permute.xlu0 9
    %227 = vperm.xlu0 %226, %v80
    %v228 = vpop.permute.xlu0 %227
    %230 = vset.pattern.permute.xlu0 9
    %231 = vperm.xlu0 %230, %v81
    %v232 = vpop.permute.xlu0 %231
    %v234 = vlaneseq
    %v235 = vshrl.u32 %v234, 7
    %v236 = vsub.s32 1, %v235
    %v237 = vrot.slane %v79, %v236
    %v238 = vmul.f32 %v228, %v237
    %v239 = vmul.f32 %v232, %v237
    %v240 = vadd.f32 %v224, %v238
    %v241 = vadd.f32 %v225, %v239
    %v242 = vld [vmem:[%s4] sm:$0xff]
    %v243 = vld [vmem:[%s4 + $0x8] sm:$0x3]
    %245 = vset.pattern.permute.xlu0 0
    %246 = vperm.xlu0 %245, %v242
    %v247 = vpop.permute.xlu0 %246
    %250 = vset.pattern.permute.xlu0 0
    %251 = vperm.xlu0 %250, %v243
    %v252 = vpop.permute.xlu0 %251
    %v254 = vadd.f32 %v240, %v247
    %v255 = vadd.f32 %v241, %v252
    %v256 = vmax.f32 %v254, 0.0
    %v257 = vmax.f32 %v255, 0.0
    %v258 = vld [vmem:[%s5] sm:$0xff]
    %v259 = vld [vmem:[%s5 + $0x8] sm:$0x3]
    %261 = vset.pattern.permute.xlu0 0
    %262 = vperm.xlu0 %261, %v258
    %v263 = vpop.permute.xlu0 %262
    %266 = vset.pattern.permute.xlu0 0
    %267 = vperm.xlu0 %266, %v259
    %v268 = vpop.permute.xlu0 %267
    %v270 = vmul.f32 %v263, %v256
    %v271 = vmul.f32 %v268, %v257
    %vm272 = vcmask 1041408
    %v273 = vsel %vm272, %v271, 0.0
    %v274 = vadd.f32 %v270, %v273
    %v275 = vrot.slane %v274, 4
    %v276 = vadd.f32 %v274, %v275
    %v277 = vrot.slane %v276, 2
    %v278 = vadd.f32 %v276, %v277
    %v279 = vrot.slane %v278, 1
    %v280 = vadd.f32 %v278, %v279
    %v281 = vld [vmem:[#allocation2] sm:$0x1]
    %283 = vset.pattern.permute.xlu0 0
    %284 = vperm.xlu0 %283, %v281
    %v285 = vpop.permute.xlu0 %284
    %v287 = vlaneseq
    %v288 = vshrl.u32 %v287, 7
    %v289 = vsub.s32 0, %v288
    %v290 = vrot.slane %v285, %v289
    %v291 = vadd.f32 %v280, %v290
    %292 = vst [vmem:[#allocation3] sm:$0x1] %v291
    // Predicated region
    $region30: #{tpu_custom_call.1} parent=1 // pred_check
      _
    $region31: #{tpu_custom_call.1} parent=1 // pred_check_branch
      %294 = sbr.rel (0) target = $region33
    $region32: #{tpu_custom_call.1} parent=1 // pred_region
      %s296 = ssub.s32 16, 16
      %297 = vsyncadd [#allocation4], %s296
      %s299 = sshll.u32 [#allocation3], 4
      %s300 = int_to_ptr.vmem [resolvable:$true] %s299
      %302 = dma.vmem_to_hbm [thread:$0]  %s300, 16, %s7, [#allocation4]
    $region33: #{tpu_custom_call.1} parent=1 // pred_fallthru
      _
    // Predicated region
    $region34: #{tpu_custom_call.1} parent=1 // pred_check
      _
    $region35: #{tpu_custom_call.1} parent=1 // pred_check_branch
      %304 = sbr.rel (0) target = $region37
    $region36: #{tpu_custom_call.1} parent=1 // pred_region
      %305 = dma.done [#allocation4], 16
    $region37: #{tpu_custom_call.1} parent=1 // pred_fallthru
      _
    %306 = vsyncpa [#allocation4], 1

</llo_original>
